<compile_context>
chip_gen: v7x
topology: tpu7x:2x2x1
jax: 0.10.0
libtpu: 0.0.40
codegen_flags: <defaults>
</compile_context>

<pallas_src>
import jax
import jax.numpy as jnp
from jax.experimental import pallas as pl
from jax.experimental.pallas import tpu as pltpu


def textrnn_kernel(pre_x_ref, h0_ref, whh_t_ref, w_t_ref, b_ref, out_ref):
    """Serial tanh-RNN recurrence + final linear for one batch block.

    pre_x_ref : (seq, bb, n_hidden)   x_t @ W_ih^T + (b_ih + b_hh), precomputed
    h0_ref    : (bb, n_hidden)        initial hidden state
    whh_t_ref : (n_hidden, n_hidden)  W_hh transposed
    w_t_ref   : (n_hidden, n_out_pad) output projection, transposed + lane-padded
    b_ref     : (1, n_out_pad)        output bias, lane-padded
    out_ref   : (bb, n_out_pad)
    """
    seq = pre_x_ref.shape[0]

    # Load the recurrent weight once; it stays in vregs across all (unrolled) steps.
    # (Further micro-opt on the MXU side would be pltpu.matmul_push_rhs to pin the
    #  RHS in MXU staging registers; jnp.dot + full unroll already lets Mosaic
    #  avoid reloading it from VMEM each step.)
    whh_t = whh_t_ref[...]
    h = h0_ref[...]

    # Fully unrolled serial recurrence: per step one MXU matmul + VPU add + EUP tanh.
    for t in range(seq):                      # seq is static and small
        h = jnp.tanh(pre_x_ref[t]
                     + jnp.dot(h, whh_t, preferred_element_type=jnp.float32))

    # Final projection; output width is lane-dense (padded to a multiple of 128).
    out_ref[...] = (jnp.dot(h, w_t_ref[...], preferred_element_type=jnp.float32)
                    + b_ref[...])


def textrnn_forward(hidden, X, params, *, block_batch=None):
    """hidden: (1, batch, n_hidden) like PyTorch; X: (batch, seq, n_class)."""
    batch, seq, n_class = X.shape
    n_hidden = params["W_hh"].shape[0]

    lane = 128
    n_out_pad = ((n_class + lane - 1) // lane) * lane   # lane-dense output width

    # Time-major input, f32.
    x_tm = jnp.transpose(X, (1, 0, 2)).astype(jnp.float32)       # (seq, batch, n_class)

    # Hoisted input projection + fused bias: one big matmul instead of `seq` tiny,
    # latency-exposed matmuls inside the recurrence. (For one-hot X this reduces to
    # an embedding row gather of W_ih^T.)
    fused_bias = (params["b_ih"] + params["b_hh"]).astype(jnp.float32)   # (n_hidden,)
    pre_x = (jnp.einsum("sbc,hc->sbh", x_tm, params["W_ih"].astype(jnp.float32))
             + fused_bias)                                        # (seq, batch, n_hidden)

    h0 = hidden[0].astype(jnp.float32)                            # (batch, n_hidden)
    whh_t = params["W_hh"].T.astype(jnp.float32)                  # (n_hidden, n_hidden)
    w_t = jnp.pad(params["W_out"].T.astype(jnp.float32),
                  ((0, 0), (0, n_out_pad - n_class)))             # (n_hidden, n_out_pad)
    b = jnp.pad(params["b"].astype(jnp.float32),
                (0, n_out_pad - n_class)).reshape(1, n_out_pad)   # (1, n_out_pad)

    # Batch-parallel grid: grid=(1,) at small batch; at large batch this tiles the
    # batch into 128-row blocks that shard across v7x's two TensorCores.
    if block_batch is None:
        block_batch = batch if batch <= 128 else 128
    assert batch % block_batch == 0, "batch must be a multiple of block_batch"
    grid = (batch // block_batch,)

    out_padded = pl.pallas_call(
        textrnn_kernel,
        out_shape=jax.ShapeDtypeStruct((batch, n_out_pad), jnp.float32),
        grid_spec=pltpu.PrefetchScalarGridSpec(
            num_scalar_prefetch=0,
            grid=grid,
            in_specs=[
                pl.BlockSpec((seq, block_batch, n_hidden), lambda i: (0, i, 0)),
                pl.BlockSpec((block_batch, n_hidden), lambda i: (i, 0)),
                pl.BlockSpec((n_hidden, n_hidden), lambda i: (0, 0)),
                pl.BlockSpec((n_hidden, n_out_pad), lambda i: (0, 0)),
                pl.BlockSpec((1, n_out_pad), lambda i: (0, 0)),
            ],
            out_specs=pl.BlockSpec((block_batch, n_out_pad), lambda i: (i, 0)),
        ),
        compiler_params=pltpu.CompilerParams(
            dimension_semantics=("parallel",)),
    )(pre_x, h0, whh_t, w_t, b)

    return out_padded[:, :n_class]


def textrnn_reference(hidden, X, params):
    """Pure-JAX reference mirroring the PyTorch forward."""
    x_tm = jnp.transpose(X, (1, 0, 2)).astype(jnp.float32)
    h = hidden[0].astype(jnp.float32)
    for t in range(x_tm.shape[0]):
        h = jnp.tanh(x_tm[t] @ params["W_ih"].T + params["b_ih"]
                     + h @ params["W_hh"].T + params["b_hh"])
    return h @ params["W_out"].T + params["b"]


if __name__ == "__main__":
    # Small shapes consistent with the module (vocab/class size, hidden dim).
    n_class = 16
    n_hidden = 32
    batch = 4
    seq = 8

    key = jax.random.PRNGKey(0)
    k = jax.random.split(key, 7)
    scale = 0.1
    params = {
        "W_ih": scale * jax.random.normal(k[0], (n_hidden, n_class), jnp.float32),
        "W_hh": scale * jax.random.normal(k[1], (n_hidden, n_hidden), jnp.float32),
        "b_ih": scale * jax.random.normal(k[2], (n_hidden,), jnp.float32),
        "b_hh": scale * jax.random.normal(k[3], (n_hidden,), jnp.float32),
        "W_out": scale * jax.random.normal(k[4], (n_class, n_hidden), jnp.float32),
        "b": jnp.ones((n_class,), jnp.float32),   # nn.Parameter(torch.ones([n_class]))
    }

    # One-hot style input like the original TextRNN example, plus zero init hidden.
    idx = jax.random.randint(k[5], (batch, seq), 0, n_class)
    X = jax.nn.one_hot(idx, n_class, dtype=jnp.float32)          # (batch, seq, n_class)
    hidden = jnp.zeros((1, batch, n_hidden), jnp.float32)        # (num_layers, batch, n_hidden)

    out = jax.block_until_ready(textrnn_forward(hidden, X, params))
    ref = textrnn_reference(hidden, X, params)

    assert out.shape == (batch, n_class)
    assert jnp.allclose(out, ref, atol=1e-5, rtol=1e-5), "mismatch vs reference"
    print("KERNEL_OK")
</pallas_src>

<mosaic_0001>
module attributes {stable_mosaic.version = 11 : i64} {
  func.func @textrnn_kernel(%arg0: i32, %arg1: memref<8x4x32xf32, #tpu.memory_space<vmem>>, %arg2: memref<4x32xf32, #tpu.memory_space<vmem>>, %arg3: memref<32x32xf32, #tpu.memory_space<vmem>>, %arg4: memref<32x128xf32, #tpu.memory_space<vmem>>, %arg5: memref<1x128xf32, #tpu.memory_space<vmem>>, %arg6: memref<4x128xf32, #tpu.memory_space<vmem>>) attributes {dimension_semantics = [#tpu.dimension_semantics<parallel>], iteration_bounds = array<i64: 1>, scalar_prefetch = 0 : i64, scratch_operands = 0 : i64, tpu.core_type = #tpu.core_type<tc>, window_params = [{transform_indices = @transform_0, window_bounds = array<i64: 8, 4, 32>}, {transform_indices = @transform_1, window_bounds = array<i64: 4, 32>}, {pipeline_mode = #tpu.pipeline_mode<synchronous>, transform_indices = @transform_2, window_bounds = array<i64: 32, 32>}, {pipeline_mode = #tpu.pipeline_mode<synchronous>, transform_indices = @transform_3, window_bounds = array<i64: 32, 128>}, {pipeline_mode = #tpu.pipeline_mode<synchronous>, transform_indices = @transform_4, window_bounds = array<i64: 1, 128>}, {transform_indices = @transform_5, window_bounds = array<i64: 4, 128>}]} {
    %c0 = arith.constant 0 : index
    %c0_0 = arith.constant 0 : index
    %0 = vector.load %arg3[%c0, %c0_0] : memref<32x32xf32, #tpu.memory_space<vmem>>, vector<32x32xf32>
    %c0_1 = arith.constant 0 : index
    %c0_2 = arith.constant 0 : index
    %1 = vector.load %arg2[%c0_1, %c0_2] : memref<4x32xf32, #tpu.memory_space<vmem>>, vector<4x32xf32>
    %c0_3 = arith.constant 0 : index
    %c0_4 = arith.constant 0 : index
    %c0_5 = arith.constant 0 : index
    %2 = vector.load %arg1[%c0_3, %c0_4, %c0_5] : memref<8x4x32xf32, #tpu.memory_space<vmem>>, vector<1x4x32xf32>
    %3 = vector.shape_cast %2 : vector<1x4x32xf32> to vector<4x32xf32>
    %cst = arith.constant dense<0.000000e+00> : vector<4x32xf32>
    %4 = tpu.matmul %1, %0, %cst {dimension_numbers = #tpu.dot_dimension_numbers<[1], [0], [0], [1], [0, 0, 1, 1], [], []>} : vector<4x32xf32>, vector<32x32xf32>, vector<4x32xf32> -> vector<4x32xf32>
    %5 = arith.addf %3, %4 : vector<4x32xf32>
    %6 = math.tanh %5 : vector<4x32xf32>
    %c1 = arith.constant 1 : index
    %c0_6 = arith.constant 0 : index
    %c0_7 = arith.constant 0 : index
    %7 = vector.load %arg1[%c1, %c0_6, %c0_7] : memref<8x4x32xf32, #tpu.memory_space<vmem>>, vector<1x4x32xf32>
    %8 = vector.shape_cast %7 : vector<1x4x32xf32> to vector<4x32xf32>
    %cst_8 = arith.constant dense<0.000000e+00> : vector<4x32xf32>
    %9 = tpu.matmul %6, %0, %cst_8 {dimension_numbers = #tpu.dot_dimension_numbers<[1], [0], [0], [1], [0, 0, 1, 1], [], []>} : vector<4x32xf32>, vector<32x32xf32>, vector<4x32xf32> -> vector<4x32xf32>
    %10 = arith.addf %8, %9 : vector<4x32xf32>
    %11 = math.tanh %10 : vector<4x32xf32>
    %c2 = arith.constant 2 : index
    %c0_9 = arith.constant 0 : index
    %c0_10 = arith.constant 0 : index
    %12 = vector.load %arg1[%c2, %c0_9, %c0_10] : memref<8x4x32xf32, #tpu.memory_space<vmem>>, vector<1x4x32xf32>
    %13 = vector.shape_cast %12 : vector<1x4x32xf32> to vector<4x32xf32>
    %cst_11 = arith.constant dense<0.000000e+00> : vector<4x32xf32>
    %14 = tpu.matmul %11, %0, %cst_11 {dimension_numbers = #tpu.dot_dimension_numbers<[1], [0], [0], [1], [0, 0, 1, 1], [], []>} : vector<4x32xf32>, vector<32x32xf32>, vector<4x32xf32> -> vector<4x32xf32>
    %15 = arith.addf %13, %14 : vector<4x32xf32>
    %16 = math.tanh %15 : vector<4x32xf32>
    %c3 = arith.constant 3 : index
    %c0_12 = arith.constant 0 : index
    %c0_13 = arith.constant 0 : index
    %17 = vector.load %arg1[%c3, %c0_12, %c0_13] : memref<8x4x32xf32, #tpu.memory_space<vmem>>, vector<1x4x32xf32>
    %18 = vector.shape_cast %17 : vector<1x4x32xf32> to vector<4x32xf32>
    %cst_14 = arith.constant dense<0.000000e+00> : vector<4x32xf32>
    %19 = tpu.matmul %16, %0, %cst_14 {dimension_numbers = #tpu.dot_dimension_numbers<[1], [0], [0], [1], [0, 0, 1, 1], [], []>} : vector<4x32xf32>, vector<32x32xf32>, vector<4x32xf32> -> vector<4x32xf32>
    %20 = arith.addf %18, %19 : vector<4x32xf32>
    %21 = math.tanh %20 : vector<4x32xf32>
    %c4 = arith.constant 4 : index
    %c0_15 = arith.constant 0 : index
    %c0_16 = arith.constant 0 : index
    %22 = vector.load %arg1[%c4, %c0_15, %c0_16] : memref<8x4x32xf32, #tpu.memory_space<vmem>>, vector<1x4x32xf32>
    %23 = vector.shape_cast %22 : vector<1x4x32xf32> to vector<4x32xf32>
    %cst_17 = arith.constant dense<0.000000e+00> : vector<4x32xf32>
    %24 = tpu.matmul %21, %0, %cst_17 {dimension_numbers = #tpu.dot_dimension_numbers<[1], [0], [0], [1], [0, 0, 1, 1], [], []>} : vector<4x32xf32>, vector<32x32xf32>, vector<4x32xf32> -> vector<4x32xf32>
    %25 = arith.addf %23, %24 : vector<4x32xf32>
    %26 = math.tanh %25 : vector<4x32xf32>
    %c5 = arith.constant 5 : index
    %c0_18 = arith.constant 0 : index
    %c0_19 = arith.constant 0 : index
    %27 = vector.load %arg1[%c5, %c0_18, %c0_19] : memref<8x4x32xf32, #tpu.memory_space<vmem>>, vector<1x4x32xf32>
    %28 = vector.shape_cast %27 : vector<1x4x32xf32> to vector<4x32xf32>
    %cst_20 = arith.constant dense<0.000000e+00> : vector<4x32xf32>
    %29 = tpu.matmul %26, %0, %cst_20 {dimension_numbers = #tpu.dot_dimension_numbers<[1], [0], [0], [1], [0, 0, 1, 1], [], []>} : vector<4x32xf32>, vector<32x32xf32>, vector<4x32xf32> -> vector<4x32xf32>
    %30 = arith.addf %28, %29 : vector<4x32xf32>
    %31 = math.tanh %30 : vector<4x32xf32>
    %c6 = arith.constant 6 : index
    %c0_21 = arith.constant 0 : index
    %c0_22 = arith.constant 0 : index
    %32 = vector.load %arg1[%c6, %c0_21, %c0_22] : memref<8x4x32xf32, #tpu.memory_space<vmem>>, vector<1x4x32xf32>
    %33 = vector.shape_cast %32 : vector<1x4x32xf32> to vector<4x32xf32>
    %cst_23 = arith.constant dense<0.000000e+00> : vector<4x32xf32>
    %34 = tpu.matmul %31, %0, %cst_23 {dimension_numbers = #tpu.dot_dimension_numbers<[1], [0], [0], [1], [0, 0, 1, 1], [], []>} : vector<4x32xf32>, vector<32x32xf32>, vector<4x32xf32> -> vector<4x32xf32>
    %35 = arith.addf %33, %34 : vector<4x32xf32>
    %36 = math.tanh %35 : vector<4x32xf32>
    %c7 = arith.constant 7 : index
    %c0_24 = arith.constant 0 : index
    %c0_25 = arith.constant 0 : index
    %37 = vector.load %arg1[%c7, %c0_24, %c0_25] : memref<8x4x32xf32, #tpu.memory_space<vmem>>, vector<1x4x32xf32>
    %38 = vector.shape_cast %37 : vector<1x4x32xf32> to vector<4x32xf32>
    %cst_26 = arith.constant dense<0.000000e+00> : vector<4x32xf32>
    %39 = tpu.matmul %36, %0, %cst_26 {dimension_numbers = #tpu.dot_dimension_numbers<[1], [0], [0], [1], [0, 0, 1, 1], [], []>} : vector<4x32xf32>, vector<32x32xf32>, vector<4x32xf32> -> vector<4x32xf32>
    %40 = arith.addf %38, %39 : vector<4x32xf32>
    %41 = math.tanh %40 : vector<4x32xf32>
    %c0_27 = arith.constant 0 : index
    %c0_28 = arith.constant 0 : index
    %42 = vector.load %arg4[%c0_27, %c0_28] : memref<32x128xf32, #tpu.memory_space<vmem>>, vector<32x128xf32>
    %cst_29 = arith.constant dense<0.000000e+00> : vector<4x128xf32>
    %43 = tpu.matmul %41, %42, %cst_29 {dimension_numbers = #tpu.dot_dimension_numbers<[1], [0], [0], [1], [0, 0, 1, 1], [], []>} : vector<4x32xf32>, vector<32x128xf32>, vector<4x128xf32> -> vector<4x128xf32>
    %c0_30 = arith.constant 0 : index
    %c0_31 = arith.constant 0 : index
    %44 = vector.load %arg5[%c0_30, %c0_31] : memref<1x128xf32, #tpu.memory_space<vmem>>, vector<1x128xf32>
    %45 = vector.broadcast %44 : vector<1x128xf32> to vector<4x128xf32>
    %46 = arith.addf %43, %45 : vector<4x128xf32>
    %c0_32 = arith.constant 0 : index
    %c0_33 = arith.constant 0 : index
    %47 = vector.load %arg6[%c0_32, %c0_33] : memref<4x128xf32, #tpu.memory_space<vmem>>, vector<4x128xf32>
    tpu.vector_store %arg6[%c0_32, %c0_33], %46 {strides = array<i32>} : memref<4x128xf32, #tpu.memory_space<vmem>>, vector<4x128xf32>,
    return
  }
  func.func @transform_0(%arg0: i32) -> (i32, i32, i32) {
    %c0_i32 = arith.constant 0 : i32
    %c0_i32_0 = arith.constant 0 : i32
    %c0_i32_1 = arith.constant 0 : i32
    return %c0_i32, %arg0, %c0_i32_0 : i32, i32, i32
  }
  func.func @transform_1(%arg0: i32) -> (i32, i32) {
    %c0_i32 = arith.constant 0 : i32
    %c0_i32_0 = arith.constant 0 : i32
    return %arg0, %c0_i32 : i32, i32
  }
  func.func @transform_2(%arg0: i32) -> (i32, i32) {
    %c0_i32 = arith.constant 0 : i32
    %c0_i32_0 = arith.constant 0 : i32
    %c0_i32_1 = arith.constant 0 : i32
    return %c0_i32, %c0_i32_0 : i32, i32
  }
  func.func @transform_3(%arg0: i32) -> (i32, i32) {
    %c0_i32 = arith.constant 0 : i32
    %c0_i32_0 = arith.constant 0 : i32
    %c0_i32_1 = arith.constant 0 : i32
    return %c0_i32, %c0_i32_0 : i32, i32
  }
  func.func @transform_4(%arg0: i32) -> (i32, i32) {
    %c0_i32 = arith.constant 0 : i32
    %c0_i32_0 = arith.constant 0 : i32
    %c0_i32_1 = arith.constant 0 : i32
    return %c0_i32, %c0_i32_0 : i32, i32
  }
  func.func @transform_5(%arg0: i32) -> (i32, i32) {
    %c0_i32 = arith.constant 0 : i32
    %c0_i32_0 = arith.constant 0 : i32
    return %arg0, %c0_i32 : i32, i32
  }
}

</mosaic_0001>

<llo_original>
// kernel: tpu_custom_call.1
$region0: #{tpu_custom_call.1}
  #allocation0 [shape = 'u32[]', space=smem, size = 0x4, offset = 0x4, fixed_abs, tag = 'smem constant byte address 0x4 - core index']
  #allocation1 [shape = 'u32[144,128]{1,0:T(1,128)}', space=vmem, size = 0x12000, scoped, tag = 'internal scratch']
  %s0 = inlined_call_operand.hbm [shape: f32[8,4,32], index: 0, kind: input, shape index: {}]
  %s1 = inlined_call_operand.hbm [shape: f32[4,32], index: 1, kind: input, shape index: {}]
  %s2 = inlined_call_operand.hbm [shape: f32[32,32], index: 2, kind: input, shape index: {}]
  %s3 = inlined_call_operand.hbm [shape: f32[32,128], index: 3, kind: input, shape index: {}]
  %s4 = inlined_call_operand.vmem [shape: f32[1,128], index: 4, kind: input, shape index: {}]
  %s5 = inlined_call_operand.hbm [shape: f32[4,128], index: 5, kind: output, shape index: {}]
  %s6 = sld [smem:[#allocation0]]
  $region46: #{tpu_custom_call.1} parent=0
    _
  %s8 = ssub.s32 1, %s6
  %s9 = scalar_select 0, %s8, %s6
  $region1: #{tpu_custom_call.1} parent=0
    #allocation2 [shape = 'u8[16384]{0}', space=vmem, size = 0x4000, scoped, tag = 'input window, operand 0, single buffered']
    #allocation3 [shape = 's32[1]{0}', space=sflag, size = 0x4, scoped, tag = 'scoped memory for tpu_custom_call.1']
    #allocation4 [shape = 's32[1]{0}', space=sflag, size = 0x4, scoped, tag = 'scoped memory for tpu_custom_call.1']
    #allocation5 [shape = 'u8[2048]{0}', space=vmem, size = 0x800, scoped, tag = 'input window, operand 1, single buffered']
    #allocation6 [shape = 's32[1]{0}', space=sflag, size = 0x4, scoped, tag = 'scoped memory for tpu_custom_call.1']
    #allocation7 [shape = 'u8[16384]{0}', space=vmem, size = 0x4000, scoped, tag = 'input window, operand 2, single buffered']
    #allocation8 [shape = 'u8[16384]{0}', space=vmem, size = 0x4000, scoped, tag = 'input window, operand 3, single buffered']
    #allocation9 [shape = 's32[1]{0}', space=sflag, size = 0x4, scoped, tag = 'scoped memory for tpu_custom_call.1']
    #allocation10 [shape = 'u8[2048]{0}', space=vmem, size = 0x800, scoped, tag = 'output window, operand 0, single buffered']
    %10 = vsyncpa [#allocation3], 0
    %11 = vsyncpa [#allocation6], 0
    %12 = vsyncpa [#allocation9], 0
    %13 = vsyncpa [#allocation4], 0
    // Predicated region
    $region2: #{tpu_custom_call.1} parent=1 // pred_check
      _
    $region3: #{tpu_custom_call.1} parent=1 // pred_check_branch
      %15 = sbr.rel (0) target = $region5
    $region4: #{tpu_custom_call.1} parent=1 // pred_region
      %s17 = ssub.s32 512, 512
      %18 = vsyncadd [#allocation3], %s17
      %s19 = sshll.u32 [#allocation2], 4
      %s20 = int_to_ptr.vmem [resolvable:$true] %s19
      %25 = dma.hbm_to_vmem [thread:$0]  %s0, 512, %s20, [#allocation3], 64, 64, 4
    $region5: #{tpu_custom_call.1} parent=1 // pred_fallthru
      _
    // Predicated region
    $region6: #{tpu_custom_call.1} parent=1 // pred_check
      _
    $region7: #{tpu_custom_call.1} parent=1 // pred_check_branch
      %27 = sbr.rel (0) target = $region9
    $region8: #{tpu_custom_call.1} parent=1 // pred_region
      %s29 = ssub.s32 64, 64
      %30 = vsyncadd [#allocation6], %s29
      %s32 = sshll.u32 [#allocation5], 4
      %s33 = int_to_ptr.vmem [resolvable:$true] %s32
      %35 = dma.hbm_to_vmem [thread:$0]  %s1, 64, %s33, [#allocation6]
    $region9: #{tpu_custom_call.1} parent=1 // pred_fallthru
      _
    // Predicated region
    $region10: #{tpu_custom_call.1} parent=1 // pred_check
      _
    $region11: #{tpu_custom_call.1} parent=1 // pred_check_branch
      %37 = sbr.rel (0) target = $region13
    $region12: #{tpu_custom_call.1} parent=1 // pred_region
      %s39 = ssub.s32 512, 512
      %40 = vsyncadd [#allocation6], %s39
      %s41 = sshll.u32 [#allocation7], 4
      %s42 = int_to_ptr.vmem [resolvable:$true] %s41
      %47 = dma.hbm_to_vmem [thread:$0]  %s2, 512, %s42, [#allocation6], 128, 128, 8
    $region13: #{tpu_custom_call.1} parent=1 // pred_fallthru
      _
    // Predicated region
    $region14: #{tpu_custom_call.1} parent=1 // pred_check
      _
    $region15: #{tpu_custom_call.1} parent=1 // pred_check_branch
      %49 = sbr.rel (0) target = $region17
    $region16: #{tpu_custom_call.1} parent=1 // pred_region
      %s51 = ssub.s32 512, 512
      %52 = vsyncadd [#allocation9], %s51
      %s53 = sshll.u32 [#allocation8], 4
      %s54 = int_to_ptr.vmem [resolvable:$true] %s53
      %59 = dma.hbm_to_vmem [thread:$0]  %s3, 512, %s54, [#allocation9], 128, 128, 8
    $region17: #{tpu_custom_call.1} parent=1 // pred_fallthru
      _
    // Predicated region
    $region18: #{tpu_custom_call.1} parent=1 // pred_check
      _
    $region19: #{tpu_custom_call.1} parent=1 // pred_check_branch
      %61 = sbr.rel (0) target = $region21
    $region20: #{tpu_custom_call.1} parent=1 // pred_region
      _
    $region21: #{tpu_custom_call.1} parent=1 // pred_fallthru
      _
    // Predicated region
    $region22: #{tpu_custom_call.1} parent=1 // pred_check
      _
    $region23: #{tpu_custom_call.1} parent=1 // pred_check_branch
      %63 = sbr.rel (0) target = $region25
    $region24: #{tpu_custom_call.1} parent=1 // pred_region
      %64 = dma.done [#allocation3], 512
    $region25: #{tpu_custom_call.1} parent=1 // pred_fallthru
      _
    // Predicated region
    $region26: #{tpu_custom_call.1} parent=1 // pred_check
      _
    $region27: #{tpu_custom_call.1} parent=1 // pred_check_branch
      %66 = sbr.rel (0) target = $region29
    $region28: #{tpu_custom_call.1} parent=1 // pred_region
      %67 = dma.done [#allocation6], 64
    $region29: #{tpu_custom_call.1} parent=1 // pred_fallthru
      _
    // Predicated region
    $region30: #{tpu_custom_call.1} parent=1 // pred_check
      _
    $region31: #{tpu_custom_call.1} parent=1 // pred_check_branch
      %69 = sbr.rel (0) target = $region33
    $region32: #{tpu_custom_call.1} parent=1 // pred_region
      %70 = dma.done [#allocation6], 512
    $region33: #{tpu_custom_call.1} parent=1 // pred_fallthru
      _
    // Predicated region
    $region34: #{tpu_custom_call.1} parent=1 // pred_check
      _
    $region35: #{tpu_custom_call.1} parent=1 // pred_check_branch
      %72 = sbr.rel (0) target = $region37
    $region36: #{tpu_custom_call.1} parent=1 // pred_region
      %73 = dma.done [#allocation9], 512
    $region37: #{tpu_custom_call.1} parent=1 // pred_fallthru
      _
    %v74 = vld [vmem:[#allocation7] sm:$0xff]
    %v75 = vld [vmem:[#allocation7 + $0x8] sm:$0xff]
    %v76 = vld [vmem:[#allocation7 + $0x10] sm:$0xff]
    %v77 = vld [vmem:[#allocation7 + $0x18] sm:$0xff]
    %v78 = vld [vmem:[#allocation5] sm:$0xf]
    %v79 = vld [vmem:[#allocation2] sm:$0xf]
    %vm80 = vcmask 261120
    %v82 = vsel %vm80, %v78, 0
    %84 = vmatprep.subr.mxu0 0.0
    %85 = vmatpush1.msra.mxu0 %v74
    %86 = vmatprep.subr.mxu0 0.0
    %87 = vmatpush1.msra.mxu0 %v75
    %88 = vmatprep.subr.mxu0 0.0
    %89 = vmatpush1.msra.mxu0 %v76
    %90 = vmatprep.subr.mxu0 0.0
    %91 = vmatpush1.msra.mxu0 %v77
    %92 = vmatprep.subr.mxu0 0.0
    %93 = vmatpush1.msra.mxu0 0.0
    %94 = vmatprep.subr.mxu0 0.0
    %95 = vmatpush1.msra.mxu0 0.0
    %96 = vmatprep.subr.mxu0 0.0
    %97 = vmatpush1.msra.mxu0 0.0
    %98 = vmatprep.subr.mxu0 0.0
    %99 = vmatpush1.msra.mxu0 0.0
    %100 = vmatprep.subr.mxu0 0.0
    %101 = vmatpush1.msra.mxu0 0.0
    %102 = vmatprep.subr.mxu0 0.0
    %103 = vmatpush1.msra.mxu0 0.0
    %104 = vmatprep.subr.mxu0 0.0
    %105 = vmatpush1.msra.mxu0 0.0
    %106 = vmatprep.subr.mxu0 0.0
    %107 = vmatpush1.msra.mxu0 0.0
    %108 = vmatprep.subr.mxu0 0.0
    %109 = vmatpush1.msra.mxu0 0.0
    %110 = vmatprep.subr.mxu0 0.0
    %111 = vmatpush1.msra.mxu0 0.0
    %112 = vmatprep.subr.mxu0 0.0
    %113 = vmatpush1.msra.mxu0 0.0
    %114 = vmatprep.subr.mxu0 0.0
    %115 = vmatpush1.msra.mxu0 0.0
    %116 = vmatprep.subr.mxu0 0.0
    %117 = vmatpush1.msra.mxu0 0.0
    %118 = vmatprep.subr.mxu0 0.0
    %119 = vmatpush1.msra.mxu0 0.0
    %120 = vmatprep.subr.mxu0 0.0
    %121 = vmatpush1.msra.mxu0 0.0
    %122 = vmatprep.subr.mxu0 0.0
    %123 = vmatpush1.msra.mxu0 0.0
    %124 = vmatprep.subr.mxu0 0.0
    %125 = vmatpush1.msra.mxu0 0.0
    %126 = vmatprep.subr.mxu0 0.0
    %127 = vmatpush1.msra.mxu0 0.0
    %128 = vmatprep.subr.mxu0 0.0
    %129 = vmatpush1.msra.mxu0 0.0
    %130 = vmatprep.subr.mxu0 0.0
    %131 = vmatpush1.msra.mxu0 0.0
    %132 = vmatprep.subr.mxu0 0.0
    %133 = vmatpush1.msra.mxu0 0.0
    %134 = vmatprep.subr.mxu0 0.0
    %135 = vmatpush1.msra.mxu0 0.0
    %136 = vmatprep.subr.mxu0 0.0
    %137 = vmatpush1.msra.mxu0 0.0
    %138 = vmatprep.subr.mxu0 0.0
    %139 = vmatpush1.msra.mxu0 0.0
    %140 = vmatprep.subr.mxu0 0.0
    %141 = vmatpush1.msra.mxu0 0.0
    %142 = vmatprep.subr.mxu0 0.0
    %143 = vmatpush1.msra.mxu0 0.0
    %144 = vmatprep.subr.mxu0 0.0
    %145 = vmatpush1.msra.mxu0 0.0
    %146 = vmatprep.subr.mxu0 0.0
    %147 = vmatpush1.msra.mxu0 0.0
    %148 = vmatprep.mubr.f32.mxu0 0.0
    %149 = vmatmul.mubr.f32.gmra.mrb[0].mxu0 %v82
    %v150 = vpop.f32.mrb[0].mxu0
    %v151 = vadd.f32 0.0, %v150
    %v152 = vpop.f32.mrb[0].mxu0
    %153 = vdwg.mxu0
    %v154 = vadd.f32 %v79, %v151
    %v155 = vtanh.pop %v154
    %s156 = scalar_lea.vmem [#allocation2], 4
    %v157 = vld [vmem:[%s156] sm:$0xf]
    %v159 = vsel %vm80, %v155, 0
    %161 = vmatprep.subr.mxu0 0.0
    %162 = vmatpush1.msra.mxu0 %v74
    %163 = vmatprep.subr.mxu0 0.0
    %164 = vmatpush1.msra.mxu0 %v75
    %165 = vmatprep.subr.mxu0 0.0
    %166 = vmatpush1.msra.mxu0 %v76
    %167 = vmatprep.subr.mxu0 0.0
    %168 = vmatpush1.msra.mxu0 %v77
    %169 = vmatprep.subr.mxu0 0.0
    %170 = vmatpush1.msra.mxu0 0.0
    %171 = vmatprep.subr.mxu0 0.0
    %172 = vmatpush1.msra.mxu0 0.0
    %173 = vmatprep.subr.mxu0 0.0
    %174 = vmatpush1.msra.mxu0 0.0
    %175 = vmatprep.subr.mxu0 0.0
    %176 = vmatpush1.msra.mxu0 0.0
    %177 = vmatprep.subr.mxu0 0.0
    %178 = vmatpush1.msra.mxu0 0.0
    %179 = vmatprep.subr.mxu0 0.0
    %180 = vmatpush1.msra.mxu0 0.0
    %181 = vmatprep.subr.mxu0 0.0
    %182 = vmatpush1.msra.mxu0 0.0
    %183 = vmatprep.subr.mxu0 0.0
    %184 = vmatpush1.msra.mxu0 0.0
    %185 = vmatprep.subr.mxu0 0.0
    %186 = vmatpush1.msra.mxu0 0.0
    %187 = vmatprep.subr.mxu0 0.0
    %188 = vmatpush1.msra.mxu0 0.0
    %189 = vmatprep.subr.mxu0 0.0
    %190 = vmatpush1.msra.mxu0 0.0
    %191 = vmatprep.subr.mxu0 0.0
    %192 = vmatpush1.msra.mxu0 0.0
    %193 = vmatprep.subr.mxu0 0.0
    %194 = vmatpush1.msra.mxu0 0.0
    %195 = vmatprep.subr.mxu0 0.0
    %196 = vmatpush1.msra.mxu0 0.0
    %197 = vmatprep.subr.mxu0 0.0
    %198 = vmatpush1.msra.mxu0 0.0
    %199 = vmatprep.subr.mxu0 0.0
    %200 = vmatpush1.msra.mxu0 0.0
    %201 = vmatprep.subr.mxu0 0.0
    %202 = vmatpush1.msra.mxu0 0.0
    %203 = vmatprep.subr.mxu0 0.0
    %204 = vmatpush1.msra.mxu0 0.0
    %205 = vmatprep.subr.mxu0 0.0
    %206 = vmatpush1.msra.mxu0 0.0
    %207 = vmatprep.subr.mxu0 0.0
    %208 = vmatpush1.msra.mxu0 0.0
    %209 = vmatprep.subr.mxu0 0.0
    %210 = vmatpush1.msra.mxu0 0.0
    %211 = vmatprep.subr.mxu0 0.0
    %212 = vmatpush1.msra.mxu0 0.0
    %213 = vmatprep.subr.mxu0 0.0
    %214 = vmatpush1.msra.mxu0 0.0
    %215 = vmatprep.subr.mxu0 0.0
    %216 = vmatpush1.msra.mxu0 0.0
    %217 = vmatprep.subr.mxu0 0.0
    %218 = vmatpush1.msra.mxu0 0.0
    %219 = vmatprep.subr.mxu0 0.0
    %220 = vmatpush1.msra.mxu0 0.0
    %221 = vmatprep.subr.mxu0 0.0
    %222 = vmatpush1.msra.mxu0 0.0
    %223 = vmatprep.subr.mxu0 0.0
    %224 = vmatpush1.msra.mxu0 0.0
    %225 = vmatprep.mubr.f32.mxu0 0.0
    %226 = vmatmul.mubr.f32.gmra.mrb[0].mxu0 %v159
    %v227 = vpop.f32.mrb[0].mxu0
    %v228 = vadd.f32 0.0, %v227
    %v229 = vpop.f32.mrb[0].mxu0
    %230 = vdwg.mxu0
    %v231 = vadd.f32 %v157, %v228
    %v232 = vtanh.pop %v231
    %s233 = scalar_lea.vmem [#allocation2], 8
    %v234 = vld [vmem:[%s233] sm:$0xf]
    %v236 = vsel %vm80, %v232, 0
    %238 = vmatprep.subr.mxu0 0.0
    %239 = vmatpush1.msra.mxu0 %v74
    %240 = vmatprep.subr.mxu0 0.0
    %241 = vmatpush1.msra.mxu0 %v75
    %242 = vmatprep.subr.mxu0 0.0
    %243 = vmatpush1.msra.mxu0 %v76
    %244 = vmatprep.subr.mxu0 0.0
    %245 = vmatpush1.msra.mxu0 %v77
    %246 = vmatprep.subr.mxu0 0.0
    %247 = vmatpush1.msra.mxu0 0.0
    %248 = vmatprep.subr.mxu0 0.0
    %249 = vmatpush1.msra.mxu0 0.0
    %250 = vmatprep.subr.mxu0 0.0
    %251 = vmatpush1.msra.mxu0 0.0
    %252 = vmatprep.subr.mxu0 0.0
    %253 = vmatpush1.msra.mxu0 0.0
    %254 = vmatprep.subr.mxu0 0.0
    %255 = vmatpush1.msra.mxu0 0.0
    %256 = vmatprep.subr.mxu0 0.0
    %257 = vmatpush1.msra.mxu0 0.0
    %258 = vmatprep.subr.mxu0 0.0
    %259 = vmatpush1.msra.mxu0 0.0
    %260 = vmatprep.subr.mxu0 0.0
    %261 = vmatpush1.msra.mxu0 0.0
    %262 = vmatprep.subr.mxu0 0.0
    %263 = vmatpush1.msra.mxu0 0.0
    %264 = vmatprep.subr.mxu0 0.0
    %265 = vmatpush1.msra.mxu0 0.0
    %266 = vmatprep.subr.mxu0 0.0
    %267 = vmatpush1.msra.mxu0 0.0
    %268 = vmatprep.subr.mxu0 0.0
    %269 = vmatpush1.msra.mxu0 0.0
    %270 = vmatprep.subr.mxu0 0.0
    %271 = vmatpush1.msra.mxu0 0.0
    %272 = vmatprep.subr.mxu0 0.0
    %273 = vmatpush1.msra.mxu0 0.0
    %274 = vmatprep.subr.mxu0 0.0
    %275 = vmatpush1.msra.mxu0 0.0
    %276 = vmatprep.subr.mxu0 0.0
    %277 = vmatpush1.msra.mxu0 0.0
    %278 = vmatprep.subr.mxu0 0.0
    %279 = vmatpush1.msra.mxu0 0.0
    %280 = vmatprep.subr.mxu0 0.0
    %281 = vmatpush1.msra.mxu0 0.0
    %282 = vmatprep.subr.mxu0 0.0
    %283 = vmatpush1.msra.mxu0 0.0
    %284 = vmatprep.subr.mxu0 0.0
    %285 = vmatpush1.msra.mxu0 0.0
    %286 = vmatprep.subr.mxu0 0.0
    %287 = vmatpush1.msra.mxu0 0.0
    %288 = vmatprep.subr.mxu0 0.0
    %289 = vmatpush1.msra.mxu0 0.0
    %290 = vmatprep.subr.mxu0 0.0
    %291 = vmatpush1.msra.mxu0 0.0
    %292 = vmatprep.subr.mxu0 0.0
    %293 = vmatpush1.msra.mxu0 0.0
    %294 = vmatprep.subr.mxu0 0.0
    %295 = vmatpush1.msra.mxu0 0.0
    %296 = vmatprep.subr.mxu0 0.0
    %297 = vmatpush1.msra.mxu0 0.0
    %298 = vmatprep.subr.mxu0 0.0
    %299 = vmatpush1.msra.mxu0 0.0
    %300 = vmatprep.subr.mxu0 0.0
    %301 = vmatpush1.msra.mxu0 0.0
    %302 = vmatprep.mubr.f32.mxu0 0.0
    %303 = vmatmul.mubr.f32.gmra.mrb[0].mxu0 %v236
    %v304 = vpop.f32.mrb[0].mxu0
    %v305 = vadd.f32 0.0, %v304
    %v306 = vpop.f32.mrb[0].mxu0
    %307 = vdwg.mxu0
    %v308 = vadd.f32 %v234, %v305
    %v309 = vtanh.pop %v308
    %s310 = scalar_lea.vmem [#allocation2], 12
    %v311 = vld [vmem:[%s310] sm:$0xf]
    %v313 = vsel %vm80, %v309, 0
    %315 = vmatprep.subr.mxu0 0.0
    %316 = vmatpush1.msra.mxu0 %v74
    %317 = vmatprep.subr.mxu0 0.0
    %318 = vmatpush1.msra.mxu0 %v75
    %319 = vmatprep.subr.mxu0 0.0
    %320 = vmatpush1.msra.mxu0 %v76
    %321 = vmatprep.subr.mxu0 0.0
    %322 = vmatpush1.msra.mxu0 %v77
    %323 = vmatprep.subr.mxu0 0.0
    %324 = vmatpush1.msra.mxu0 0.0
    %325 = vmatprep.subr.mxu0 0.0
    %326 = vmatpush1.msra.mxu0 0.0
    %327 = vmatprep.subr.mxu0 0.0
    %328 = vmatpush1.msra.mxu0 0.0
    %329 = vmatprep.subr.mxu0 0.0
    %330 = vmatpush1.msra.mxu0 0.0
    %331 = vmatprep.subr.mxu0 0.0
    %332 = vmatpush1.msra.mxu0 0.0
    %333 = vmatprep.subr.mxu0 0.0
    %334 = vmatpush1.msra.mxu0 0.0
    %335 = vmatprep.subr.mxu0 0.0
    %336 = vmatpush1.msra.mxu0 0.0
    %337 = vmatprep.subr.mxu0 0.0
    %338 = vmatpush1.msra.mxu0 0.0
    %339 = vmatprep.subr.mxu0 0.0
    %340 = vmatpush1.msra.mxu0 0.0
    %341 = vmatprep.subr.mxu0 0.0
    %342 = vmatpush1.msra.mxu0 0.0
    %343 = vmatprep.subr.mxu0 0.0
    %344 = vmatpush1.msra.mxu0 0.0
    %345 = vmatprep.subr.mxu0 0.0
    %346 = vmatpush1.msra.mxu0 0.0
    %347 = vmatprep.subr.mxu0 0.0
    %348 = vmatpush1.msra.mxu0 0.0
    %349 = vmatprep.subr.mxu0 0.0
    %350 = vmatpush1.msra.mxu0 0.0
    %351 = vmatprep.subr.mxu0 0.0
    %352 = vmatpush1.msra.mxu0 0.0
    %353 = vmatprep.subr.mxu0 0.0
    %354 = vmatpush1.msra.mxu0 0.0
    %355 = vmatprep.subr.mxu0 0.0
    %356 = vmatpush1.msra.mxu0 0.0
    %357 = vmatprep.subr.mxu0 0.0
    %358 = vmatpush1.msra.mxu0 0.0
    %359 = vmatprep.subr.mxu0 0.0
    %360 = vmatpush1.msra.mxu0 0.0
    %361 = vmatprep.subr.mxu0 0.0
    %362 = vmatpush1.msra.mxu0 0.0
    %363 = vmatprep.subr.mxu0 0.0
    %364 = vmatpush1.msra.mxu0 0.0
    %365 = vmatprep.subr.mxu0 0.0
    %366 = vmatpush1.msra.mxu0 0.0
    %367 = vmatprep.subr.mxu0 0.0
    %368 = vmatpush1.msra.mxu0 0.0
    %369 = vmatprep.subr.mxu0 0.0
    %370 = vmatpush1.msra.mxu0 0.0
    %371 = vmatprep.subr.mxu0 0.0
    %372 = vmatpush1.msra.mxu0 0.0
    %373 = vmatprep.subr.mxu0 0.0
    %374 = vmatpush1.msra.mxu0 0.0
    %375 = vmatprep.subr.mxu0 0.0
    %376 = vmatpush1.msra.mxu0 0.0
    %377 = vmatprep.subr.mxu0 0.0
    %378 = vmatpush1.msra.mxu0 0.0
    %379 = vmatprep.mubr.f32.mxu0 0.0
    %380 = vmatmul.mubr.f32.gmra.mrb[0].mxu0 %v313
    %v381 = vpop.f32.mrb[0].mxu0
    %v382 = vadd.f32 0.0, %v381
    %v383 = vpop.f32.mrb[0].mxu0
    %384 = vdwg.mxu0
    %v385 = vadd.f32 %v311, %v382
    %v386 = vtanh.pop %v385
    %s387 = scalar_lea.vmem [#allocation2], 16
    %v388 = vld [vmem:[%s387] sm:$0xf]
    %v390 = vsel %vm80, %v386, 0
    %392 = vmatprep.subr.mxu0 0.0
    %393 = vmatpush1.msra.mxu0 %v74
    %394 = vmatprep.subr.mxu0 0.0
    %395 = vmatpush1.msra.mxu0 %v75
    %396 = vmatprep.subr.mxu0 0.0
    %397 = vmatpush1.msra.mxu0 %v76
    %398 = vmatprep.subr.mxu0 0.0
    %399 = vmatpush1.msra.mxu0 %v77
    %400 = vmatprep.subr.mxu0 0.0
    %401 = vmatpush1.msra.mxu0 0.0
    %402 = vmatprep.subr.mxu0 0.0
    %403 = vmatpush1.msra.mxu0 0.0
    %404 = vmatprep.subr.mxu0 0.0
    %405 = vmatpush1.msra.mxu0 0.0
    %406 = vmatprep.subr.mxu0 0.0
    %407 = vmatpush1.msra.mxu0 0.0
    %408 = vmatprep.subr.mxu0 0.0
    %409 = vmatpush1.msra.mxu0 0.0
    %410 = vmatprep.subr.mxu0 0.0
    %411 = vmatpush1.msra.mxu0 0.0
    %412 = vmatprep.subr.mxu0 0.0
    %413 = vmatpush1.msra.mxu0 0.0
    %414 = vmatprep.subr.mxu0 0.0
    %415 = vmatpush1.msra.mxu0 0.0
    %416 = vmatprep.subr.mxu0 0.0
    %417 = vmatpush1.msra.mxu0 0.0
    %418 = vmatprep.subr.mxu0 0.0
    %419 = vmatpush1.msra.mxu0 0.0
    %420 = vmatprep.subr.mxu0 0.0
    %421 = vmatpush1.msra.mxu0 0.0
    %422 = vmatprep.subr.mxu0 0.0
    %423 = vmatpush1.msra.mxu0 0.0
    %424 = vmatprep.subr.mxu0 0.0
    %425 = vmatpush1.msra.mxu0 0.0
    %426 = vmatprep.subr.mxu0 0.0
    %427 = vmatpush1.msra.mxu0 0.0
    %428 = vmatprep.subr.mxu0 0.0
    %429 = vmatpush1.msra.mxu0 0.0
    %430 = vmatprep.subr.mxu0 0.0
    %431 = vmatpush1.msra.mxu0 0.0
    %432 = vmatprep.subr.mxu0 0.0
    %433 = vmatpush1.msra.mxu0 0.0
    %434 = vmatprep.subr.mxu0 0.0
    %435 = vmatpush1.msra.mxu0 0.0
    %436 = vmatprep.subr.mxu0 0.0
    %437 = vmatpush1.msra.mxu0 0.0
    %438 = vmatprep.subr.mxu0 0.0
    %439 = vmatpush1.msra.mxu0 0.0
    %440 = vmatprep.subr.mxu0 0.0
    %441 = vmatpush1.msra.mxu0 0.0
    %442 = vmatprep.subr.mxu0 0.0
    %443 = vmatpush1.msra.mxu0 0.0
    %444 = vmatprep.subr.mxu0 0.0
    %445 = vmatpush1.msra.mxu0 0.0
    %446 = vmatprep.subr.mxu0 0.0
    %447 = vmatpush1.msra.mxu0 0.0
    %448 = vmatprep.subr.mxu0 0.0
    %449 = vmatpush1.msra.mxu0 0.0
    %450 = vmatprep.subr.mxu0 0.0
    %451 = vmatpush1.msra.mxu0 0.0
    %452 = vmatprep.subr.mxu0 0.0
    %453 = vmatpush1.msra.mxu0 0.0
    %454 = vmatprep.subr.mxu0 0.0
    %455 = vmatpush1.msra.mxu0 0.0
    %456 = vmatprep.mubr.f32.mxu0 0.0
    %457 = vmatmul.mubr.f32.gmra.mrb[0].mxu0 %v390
    %v458 = vpop.f32.mrb[0].mxu0
    %v459 = vadd.f32 0.0, %v458
    %v460 = vpop.f32.mrb[0].mxu0
    %461 = vdwg.mxu0
    %v462 = vadd.f32 %v388, %v459
    %v463 = vtanh.pop %v462
    %s464 = scalar_lea.vmem [#allocation2], 20
    %v465 = vld [vmem:[%s464] sm:$0xf]
    %v467 = vsel %vm80, %v463, 0
    %469 = vmatprep.subr.mxu0 0.0
    %470 = vmatpush1.msra.mxu0 %v74
    %471 = vmatprep.subr.mxu0 0.0
    %472 = vmatpush1.msra.mxu0 %v75
    %473 = vmatprep.subr.mxu0 0.0
    %474 = vmatpush1.msra.mxu0 %v76
    %475 = vmatprep.subr.mxu0 0.0
    %476 = vmatpush1.msra.mxu0 %v77
    %477 = vmatprep.subr.mxu0 0.0
    %478 = vmatpush1.msra.mxu0 0.0
    %479 = vmatprep.subr.mxu0 0.0
    %480 = vmatpush1.msra.mxu0 0.0
    %481 = vmatprep.subr.mxu0 0.0
    %482 = vmatpush1.msra.mxu0 0.0
    %483 = vmatprep.subr.mxu0 0.0
    %484 = vmatpush1.msra.mxu0 0.0
    %485 = vmatprep.subr.mxu0 0.0
    %486 = vmatpush1.msra.mxu0 0.0
    %487 = vmatprep.subr.mxu0 0.0
    %488 = vmatpush1.msra.mxu0 0.0
    %489 = vmatprep.subr.mxu0 0.0
    %490 = vmatpush1.msra.mxu0 0.0
    %491 = vmatprep.subr.mxu0 0.0
    %492 = vmatpush1.msra.mxu0 0.0
    %493 = vmatprep.subr.mxu0 0.0
    %494 = vmatpush1.msra.mxu0 0.0
    %495 = vmatprep.subr.mxu0 0.0
    %496 = vmatpush1.msra.mxu0 0.0
    %497 = vmatprep.subr.mxu0 0.0
    %498 = vmatpush1.msra.mxu0 0.0
    %499 = vmatprep.subr.mxu0 0.0
    %500 = vmatpush1.msra.mxu0 0.0
    %501 = vmatprep.subr.mxu0 0.0
    %502 = vmatpush1.msra.mxu0 0.0
    %503 = vmatprep.subr.mxu0 0.0
    %504 = vmatpush1.msra.mxu0 0.0
    %505 = vmatprep.subr.mxu0 0.0
    %506 = vmatpush1.msra.mxu0 0.0
    %507 = vmatprep.subr.mxu0 0.0
    %508 = vmatpush1.msra.mxu0 0.0
    %509 = vmatprep.subr.mxu0 0.0
    %510 = vmatpush1.msra.mxu0 0.0
    %511 = vmatprep.subr.mxu0 0.0
    %512 = vmatpush1.msra.mxu0 0.0
    %513 = vmatprep.subr.mxu0 0.0
    %514 = vmatpush1.msra.mxu0 0.0
    %515 = vmatprep.subr.mxu0 0.0
    %516 = vmatpush1.msra.mxu0 0.0
    %517 = vmatprep.subr.mxu0 0.0
    %518 = vmatpush1.msra.mxu0 0.0
    %519 = vmatprep.subr.mxu0 0.0
    %520 = vmatpush1.msra.mxu0 0.0
    %521 = vmatprep.subr.mxu0 0.0
    %522 = vmatpush1.msra.mxu0 0.0
    %523 = vmatprep.subr.mxu0 0.0
    %524 = vmatpush1.msra.mxu0 0.0
    %525 = vmatprep.subr.mxu0 0.0
    %526 = vmatpush1.msra.mxu0 0.0
    %527 = vmatprep.subr.mxu0 0.0
    %528 = vmatpush1.msra.mxu0 0.0
    %529 = vmatprep.subr.mxu0 0.0
    %530 = vmatpush1.msra.mxu0 0.0
    %531 = vmatprep.subr.mxu0 0.0
    %532 = vmatpush1.msra.mxu0 0.0
    %533 = vmatprep.mubr.f32.mxu0 0.0
    %534 = vmatmul.mubr.f32.gmra.mrb[0].mxu0 %v467
    %v535 = vpop.f32.mrb[0].mxu0
    %v536 = vadd.f32 0.0, %v535
    %v537 = vpop.f32.mrb[0].mxu0
    %538 = vdwg.mxu0
    %v539 = vadd.f32 %v465, %v536
    %v540 = vtanh.pop %v539
    %s541 = scalar_lea.vmem [#allocation2], 24
    %v542 = vld [vmem:[%s541] sm:$0xf]
    %v544 = vsel %vm80, %v540, 0
    %546 = vmatprep.subr.mxu0 0.0
    %547 = vmatpush1.msra.mxu0 %v74
    %548 = vmatprep.subr.mxu0 0.0
    %549 = vmatpush1.msra.mxu0 %v75
    %550 = vmatprep.subr.mxu0 0.0
    %551 = vmatpush1.msra.mxu0 %v76
    %552 = vmatprep.subr.mxu0 0.0
    %553 = vmatpush1.msra.mxu0 %v77
    %554 = vmatprep.subr.mxu0 0.0
    %555 = vmatpush1.msra.mxu0 0.0
    %556 = vmatprep.subr.mxu0 0.0
    %557 = vmatpush1.msra.mxu0 0.0
    %558 = vmatprep.subr.mxu0 0.0
    %559 = vmatpush1.msra.mxu0 0.0
    %560 = vmatprep.subr.mxu0 0.0
    %561 = vmatpush1.msra.mxu0 0.0
    %562 = vmatprep.subr.mxu0 0.0
    %563 = vmatpush1.msra.mxu0 0.0
    %564 = vmatprep.subr.mxu0 0.0
    %565 = vmatpush1.msra.mxu0 0.0
    %566 = vmatprep.subr.mxu0 0.0
    %567 = vmatpush1.msra.mxu0 0.0
    %568 = vmatprep.subr.mxu0 0.0
    %569 = vmatpush1.msra.mxu0 0.0
    %570 = vmatprep.subr.mxu0 0.0
    %571 = vmatpush1.msra.mxu0 0.0
    %572 = vmatprep.subr.mxu0 0.0
    %573 = vmatpush1.msra.mxu0 0.0
    %574 = vmatprep.subr.mxu0 0.0
    %575 = vmatpush1.msra.mxu0 0.0
    %576 = vmatprep.subr.mxu0 0.0
    %577 = vmatpush1.msra.mxu0 0.0
    %578 = vmatprep.subr.mxu0 0.0
    %579 = vmatpush1.msra.mxu0 0.0
    %580 = vmatprep.subr.mxu0 0.0
    %581 = vmatpush1.msra.mxu0 0.0
    %582 = vmatprep.subr.mxu0 0.0
    %583 = vmatpush1.msra.mxu0 0.0
    %584 = vmatprep.subr.mxu0 0.0
    %585 = vmatpush1.msra.mxu0 0.0
    %586 = vmatprep.subr.mxu0 0.0
    %587 = vmatpush1.msra.mxu0 0.0
    %588 = vmatprep.subr.mxu0 0.0
    %589 = vmatpush1.msra.mxu0 0.0
    %590 = vmatprep.subr.mxu0 0.0
    %591 = vmatpush1.msra.mxu0 0.0
    %592 = vmatprep.subr.mxu0 0.0
    %593 = vmatpush1.msra.mxu0 0.0
    %594 = vmatprep.subr.mxu0 0.0
    %595 = vmatpush1.msra.mxu0 0.0
    %596 = vmatprep.subr.mxu0 0.0
    %597 = vmatpush1.msra.mxu0 0.0
    %598 = vmatprep.subr.mxu0 0.0
    %599 = vmatpush1.msra.mxu0 0.0
    %600 = vmatprep.subr.mxu0 0.0
    %601 = vmatpush1.msra.mxu0 0.0
    %602 = vmatprep.subr.mxu0 0.0
    %603 = vmatpush1.msra.mxu0 0.0
    %604 = vmatprep.subr.mxu0 0.0
    %605 = vmatpush1.msra.mxu0 0.0
    %606 = vmatprep.subr.mxu0 0.0
    %607 = vmatpush1.msra.mxu0 0.0
    %608 = vmatprep.subr.mxu0 0.0
    %609 = vmatpush1.msra.mxu0 0.0
    %610 = vmatprep.mubr.f32.mxu0 0.0
    %611 = vmatmul.mubr.f32.gmra.mrb[0].mxu0 %v544
    %v612 = vpop.f32.mrb[0].mxu0
    %v613 = vadd.f32 0.0, %v612
    %v614 = vpop.f32.mrb[0].mxu0
    %615 = vdwg.mxu0
    %v616 = vadd.f32 %v542, %v613
    %v617 = vtanh.pop %v616
    %s618 = scalar_lea.vmem [#allocation2], 28
    %v619 = vld [vmem:[%s618] sm:$0xf]
    %v621 = vsel %vm80, %v617, 0
    %623 = vmatprep.subr.mxu0 0.0
    %624 = vmatpush1.msra.mxu0 %v74
    %625 = vmatprep.subr.mxu0 0.0
    %626 = vmatpush1.msra.mxu0 %v75
    %627 = vmatprep.subr.mxu0 0.0
    %628 = vmatpush1.msra.mxu0 %v76
    %629 = vmatprep.subr.mxu0 0.0
    %630 = vmatpush1.msra.mxu0 %v77
    %631 = vmatprep.subr.mxu0 0.0
    %632 = vmatpush1.msra.mxu0 0.0
    %633 = vmatprep.subr.mxu0 0.0
    %634 = vmatpush1.msra.mxu0 0.0
    %635 = vmatprep.subr.mxu0 0.0
    %636 = vmatpush1.msra.mxu0 0.0
    %637 = vmatprep.subr.mxu0 0.0
    %638 = vmatpush1.msra.mxu0 0.0
    %639 = vmatprep.subr.mxu0 0.0
    %640 = vmatpush1.msra.mxu0 0.0
    %641 = vmatprep.subr.mxu0 0.0
    %642 = vmatpush1.msra.mxu0 0.0
    %643 = vmatprep.subr.mxu0 0.0
    %644 = vmatpush1.msra.mxu0 0.0
    %645 = vmatprep.subr.mxu0 0.0
    %646 = vmatpush1.msra.mxu0 0.0
    %647 = vmatprep.subr.mxu0 0.0
    %648 = vmatpush1.msra.mxu0 0.0
    %649 = vmatprep.subr.mxu0 0.0
    %650 = vmatpush1.msra.mxu0 0.0
    %651 = vmatprep.subr.mxu0 0.0
    %652 = vmatpush1.msra.mxu0 0.0
    %653 = vmatprep.subr.mxu0 0.0
    %654 = vmatpush1.msra.mxu0 0.0
    %655 = vmatprep.subr.mxu0 0.0
    %656 = vmatpush1.msra.mxu0 0.0
    %657 = vmatprep.subr.mxu0 0.0
    %658 = vmatpush1.msra.mxu0 0.0
    %659 = vmatprep.subr.mxu0 0.0
    %660 = vmatpush1.msra.mxu0 0.0
    %661 = vmatprep.subr.mxu0 0.0
    %662 = vmatpush1.msra.mxu0 0.0
    %663 = vmatprep.subr.mxu0 0.0
    %664 = vmatpush1.msra.mxu0 0.0
    %665 = vmatprep.subr.mxu0 0.0
    %666 = vmatpush1.msra.mxu0 0.0
    %667 = vmatprep.subr.mxu0 0.0
    %668 = vmatpush1.msra.mxu0 0.0
    %669 = vmatprep.subr.mxu0 0.0
    %670 = vmatpush1.msra.mxu0 0.0
    %671 = vmatprep.subr.mxu0 0.0
    %672 = vmatpush1.msra.mxu0 0.0
    %673 = vmatprep.subr.mxu0 0.0
    %674 = vmatpush1.msra.mxu0 0.0
    %675 = vmatprep.subr.mxu0 0.0
    %676 = vmatpush1.msra.mxu0 0.0
    %677 = vmatprep.subr.mxu0 0.0
    %678 = vmatpush1.msra.mxu0 0.0
    %679 = vmatprep.subr.mxu0 0.0
    %680 = vmatpush1.msra.mxu0 0.0
    %681 = vmatprep.subr.mxu0 0.0
    %682 = vmatpush1.msra.mxu0 0.0
    %683 = vmatprep.subr.mxu0 0.0
    %684 = vmatpush1.msra.mxu0 0.0
    %685 = vmatprep.subr.mxu0 0.0
    %686 = vmatpush1.msra.mxu0 0.0
    %687 = vmatprep.mubr.f32.mxu0 0.0
    %688 = vmatmul.mubr.f32.gmra.mrb[0].mxu0 %v621
    %v689 = vpop.f32.mrb[0].mxu0
    %v690 = vadd.f32 0.0, %v689
    %v691 = vpop.f32.mrb[0].mxu0
    %692 = vdwg.mxu0
    %v693 = vadd.f32 %v619, %v690
    %v694 = vtanh.pop %v693
    %v695 = vld [vmem:[#allocation8] sm:$0xff]
    %v696 = vld [vmem:[#allocation8 + $0x8] sm:$0xff]
    %v697 = vld [vmem:[#allocation8 + $0x10] sm:$0xff]
    %v698 = vld [vmem:[#allocation8 + $0x18] sm:$0xff]
    %v699 = vld [vmem:[%s4] sm:$0x1]
    %v701 = vlaneseq
    %v702 = vshrl.u32 %v701, 7
    %v703 = vsub.s32 0, %v702
    %v704 = vrot.slane %v699, %v703
    %v707 = vsel %vm80, %v694, 0
    %709 = vmatprep.subr.mxu0 0.0
    %710 = vmatpush1.msra.mxu0 %v695
    %711 = vmatprep.subr.mxu0 0.0
    %712 = vmatpush1.msra.mxu0 %v696
    %713 = vmatprep.subr.mxu0 0.0
    %714 = vmatpush1.msra.mxu0 %v697
    %715 = vmatprep.subr.mxu0 0.0
    %716 = vmatpush1.msra.mxu0 %v698
    %717 = vmatprep.subr.mxu0 0.0
    %718 = vmatpush1.msra.mxu0 0.0
    %719 = vmatprep.subr.mxu0 0.0
    %720 = vmatpush1.msra.mxu0 0.0
    %721 = vmatprep.subr.mxu0 0.0
    %722 = vmatpush1.msra.mxu0 0.0
    %723 = vmatprep.subr.mxu0 0.0
    %724 = vmatpush1.msra.mxu0 0.0
    %725 = vmatprep.subr.mxu0 0.0
    %726 = vmatpush1.msra.mxu0 0.0
    %727 = vmatprep.subr.mxu0 0.0
    %728 = vmatpush1.msra.mxu0 0.0
    %729 = vmatprep.subr.mxu0 0.0
    %730 = vmatpush1.msra.mxu0 0.0
    %731 = vmatprep.subr.mxu0 0.0
    %732 = vmatpush1.msra.mxu0 0.0
    %733 = vmatprep.subr.mxu0 0.0
    %734 = vmatpush1.msra.mxu0 0.0
    %735 = vmatprep.subr.mxu0 0.0
    %736 = vmatpush1.msra.mxu0 0.0
    %737 = vmatprep.subr.mxu0 0.0
    %738 = vmatpush1.msra.mxu0 0.0
    %739 = vmatprep.subr.mxu0 0.0
    %740 = vmatpush1.msra.mxu0 0.0
    %741 = vmatprep.subr.mxu0 0.0
    %742 = vmatpush1.msra.mxu0 0.0
    %743 = vmatprep.subr.mxu0 0.0
    %744 = vmatpush1.msra.mxu0 0.0
    %745 = vmatprep.subr.mxu0 0.0
    %746 = vmatpush1.msra.mxu0 0.0
    %747 = vmatprep.subr.mxu0 0.0
    %748 = vmatpush1.msra.mxu0 0.0
    %749 = vmatprep.subr.mxu0 0.0
    %750 = vmatpush1.msra.mxu0 0.0
    %751 = vmatprep.subr.mxu0 0.0
    %752 = vmatpush1.msra.mxu0 0.0
    %753 = vmatprep.subr.mxu0 0.0
    %754 = vmatpush1.msra.mxu0 0.0
    %755 = vmatprep.subr.mxu0 0.0
    %756 = vmatpush1.msra.mxu0 0.0
    %757 = vmatprep.subr.mxu0 0.0
    %758 = vmatpush1.msra.mxu0 0.0
    %759 = vmatprep.subr.mxu0 0.0
    %760 = vmatpush1.msra.mxu0 0.0
    %761 = vmatprep.subr.mxu0 0.0
    %762 = vmatpush1.msra.mxu0 0.0
    %763 = vmatprep.subr.mxu0 0.0
    %764 = vmatpush1.msra.mxu0 0.0
    %765 = vmatprep.subr.mxu0 0.0
    %766 = vmatpush1.msra.mxu0 0.0
    %767 = vmatprep.subr.mxu0 0.0
    %768 = vmatpush1.msra.mxu0 0.0
    %769 = vmatprep.subr.mxu0 0.0
    %770 = vmatpush1.msra.mxu0 0.0
    %771 = vmatprep.subr.mxu0 0.0
    %772 = vmatpush1.msra.mxu0 0.0
    %773 = vmatprep.mubr.f32.mxu0 0.0
    %774 = vmatmul.mubr.f32.gmra.mrb[0].mxu0 %v707
    %v775 = vpop.f32.mrb[0].mxu0
    %v776 = vadd.f32 %v704, %v775
    %v777 = vpop.f32.mrb[0].mxu0
    %778 = vdwg.mxu0
    %779 = vst [vmem:[#allocation10] sm:$0xf] %v776
    // Predicated region
    $region38: #{tpu_custom_call.1} parent=1 // pred_check
      _
    $region39: #{tpu_custom_call.1} parent=1 // pred_check_branch
      %781 = sbr.rel (0) target = $region41
    $region40: #{tpu_custom_call.1} parent=1 // pred_region
      %s783 = ssub.s32 64, 64
      %784 = vsyncadd [#allocation4], %s783
      %s786 = sshll.u32 [#allocation10], 4
      %s787 = int_to_ptr.vmem [resolvable:$true] %s786
      %789 = dma.vmem_to_hbm [thread:$0]  %s787, 64, %s5, [#allocation4]
    $region41: #{tpu_custom_call.1} parent=1 // pred_fallthru
      _
    // Predicated region
    $region42: #{tpu_custom_call.1} parent=1 // pred_check
      _
    $region43: #{tpu_custom_call.1} parent=1 // pred_check_branch
      %791 = sbr.rel (0) target = $region45
    $region44: #{tpu_custom_call.1} parent=1 // pred_region
      %792 = dma.done [#allocation4], 64
    $region45: #{tpu_custom_call.1} parent=1 // pred_fallthru
      _
    %793 = vsyncpa [#allocation3], 1
    %794 = vsyncpa [#allocation6], 1
    %795 = vsyncpa [#allocation9], 1
    %796 = vsyncpa [#allocation4], 1

</llo_original>
